<compile_context>
chip_gen: v6e
topology: v6e:2x2x1
jax: 0.10.0
libtpu: 0.0.40
codegen_flags: <defaults>
</compile_context>

<pallas_src>
import functools

import jax
import jax.numpy as jnp
from jax.experimental import pallas as pl
from jax.experimental.pallas import tpu as pltpu


def _rmsnorm_kernel(x_ref, o_ref, *, inv_d: float):
    """x_ref/o_ref: (TM, Dp) tile of the flattened (rows, Dp) input.

    inv_d is 1 / true_D; padded lanes (if any) are zero, so sum(x^2) is the
    same as over the unpadded row.
    """
    xf = x_ref[...].astype(jnp.float32)
    sum_sq = jnp.sum(xf * xf, axis=-1, keepdims=True)          # (TM, 1) f32
    scale = jax.lax.rsqrt(sum_sq * inv_d)                      # EUP rsqrt
    # Re-read the input for the store instead of reusing `xf`, so the full
    # (TM, Dp) f32 temporary need not stay live across the whole-row reduction.
    o_ref[...] = (x_ref[...].astype(jnp.float32) * scale).astype(o_ref.dtype)


def _vmem_capacity_bytes() -> int:
    """Per-TensorCore VMEM capacity (128 MiB on v5e/v6e, 64 MiB on v7x)."""
    try:
        cap = getattr(pltpu.get_tpu_info(), "vmem_capacity_bytes", None)
        if cap:
            return int(cap)
    except Exception:
        pass
    try:
        kind = jax.devices()[0].device_kind.lower()
        if "v7" in kind or "7x" in kind:
            return 64 * (1 << 20)
    except Exception:
        pass
    return 128 * (1 << 20)


def _select_tiling(m: int, d_pad: int, dtype):
    """Pick (row_tile, vmem_limit_bytes, buffer_count) from a VMEM budget."""
    elem_bytes = jnp.dtype(dtype).itemsize
    small_vmem = _vmem_capacity_bytes() <= 64 * (1 << 20)      # v7x-class
    if small_vmem:
        tile_budget = 6 * (1 << 20)      # ~6 MiB per tile
        vmem_limit = 44 * (1 << 20)      # headroom under the 64 MiB ceiling
        buffers = 3                      # deeper pipeline for smaller tiles
    else:
        tile_budget = 12 * (1 << 20)     # ~12 MiB per tile (128 MiB VMEM)
        vmem_limit = 96 * (1 << 20)
        buffers = 2                      # default double buffering is enough

    row_bytes = max(1, d_pad * elem_bytes)
    tm = (tile_budget // row_bytes) // 8 * 8
    tm = max(8, tm)

    if tm >= m:
        # Keep >=2 grid steps when possible so a "parallel" grid axis gives
        # both v7x TensorCores work.
        if m > 8:
            tm = max(8, (m // 2) // 8 * 8)
        else:
            tm = m        # full-extent block (legal even if not 8-aligned)
    return tm, vmem_limit, buffers


def _row_block_spec(tm: int, d_pad: int, buffers: int) -> pl.BlockSpec:
    index_map = lambda i: (i, 0)
    if buffers != 2:
        try:
            return pl.BlockSpec((tm, d_pad), index_map,
                                pipeline_mode=pl.Buffered(buffers))
        except TypeError:
            # Older jax without pipeline_mode: fall back to default buffering.
            pass
    return pl.BlockSpec((tm, d_pad), index_map)


def rmsnorm_pallas(x):
    """RMS-normalize over the last axis of x (any leading shape)."""
    orig_shape = x.shape
    d = orig_shape[-1]
    x2d = x.reshape(-1, d)
    m = x2d.shape[0]

    # Lane-dense stores: pad the last dim up to a multiple of 128 if needed.
    d_pad = d if d % 128 == 0 else ((d + 127) // 128) * 128
    if d_pad != d:
        x2d = jnp.pad(x2d, ((0, 0), (0, d_pad - d)))

    tm, vmem_limit, buffers = _select_tiling(m, d_pad, x.dtype)
    grid = (pl.cdiv(m, tm),)

    kernel = functools.partial(_rmsnorm_kernel, inv_d=1.0 / d)

    out = pl.pallas_call(
        kernel,
        out_shape=jax.ShapeDtypeStruct((m, d_pad), x.dtype),
        grid_spec=pltpu.PrefetchScalarGridSpec(
            num_scalar_prefetch=0,
            grid=grid,
            in_specs=[_row_block_spec(tm, d_pad, buffers)],
            out_specs=_row_block_spec(tm, d_pad, buffers),
        ),
        compiler_params=pltpu.CompilerParams(
            dimension_semantics=("parallel",),
            vmem_limit_bytes=vmem_limit,
        ),
    )(x2d)

    if d_pad != d:
        out = out[:, :d]
    return out.reshape(orig_shape)


def rmsnorm_reference(x):
    """Pure-JAX transcription of the PyTorch forward (for verification)."""
    rms = jnp.sqrt(jnp.mean(jnp.square(x), axis=-1, keepdims=True))
    return x / rms


if __name__ == "__main__":
    # Small shapes consistent with the module docstring example ((1, 10, 256)):
    # batch=2, seq=8, hidden=256.
    B, S, D = 2, 8, 256

    key = jax.random.PRNGKey(0)
    x = jax.random.normal(key, (B, S, D), dtype=jnp.float32)

    out = jax.block_until_ready(rmsnorm_pallas(x))
    ref = rmsnorm_reference(x)

    assert out.shape == (B, S, D)
    assert jnp.allclose(out, ref, rtol=1e-5, atol=1e-5), (
        f"max abs err {jnp.max(jnp.abs(out - ref))}")
    print("KERNEL_OK")
</pallas_src>

<mosaic_0001>
module attributes {stable_mosaic.version = 11 : i64} {
  func.func @_rmsnorm_kernel(%arg0: i32, %arg1: memref<8x256xf32, #tpu.memory_space<vmem>>, %arg2: memref<8x256xf32, #tpu.memory_space<vmem>>) attributes {dimension_semantics = [#tpu.dimension_semantics<parallel>], iteration_bounds = array<i64: 2>, scalar_prefetch = 0 : i64, scratch_operands = 0 : i64, tpu.core_type = #tpu.core_type<tc>, window_params = [{transform_indices = @transform_0, window_bounds = array<i64: 8, 256>}, {transform_indices = @transform_1, window_bounds = array<i64: 8, 256>}]} {
    %c0 = arith.constant 0 : index
    %c0_0 = arith.constant 0 : index
    %0 = vector.load %arg1[%c0, %c0_0] : memref<8x256xf32, #tpu.memory_space<vmem>>, vector<8x256xf32>
    %1 = arith.mulf %0, %0 : vector<8x256xf32>
    %cst = arith.constant dense<0.000000e+00> : vector<8xf32>
    %2 = vector.multi_reduction <add>, %1, %cst [1] : vector<8x256xf32> to vector<8xf32>
    %3 = vector.shape_cast %2 : vector<8xf32> to vector<8x1xf32>
    %cst_1 = arith.constant 3.906250e-03 : f32
    %4 = vector.broadcast %cst_1 : f32 to vector<8x1xf32>
    %5 = arith.mulf %3, %4 : vector<8x1xf32>
    %6 = math.rsqrt %5 : vector<8x1xf32>
    %c0_2 = arith.constant 0 : index
    %c0_3 = arith.constant 0 : index
    %7 = vector.load %arg1[%c0_2, %c0_3] : memref<8x256xf32, #tpu.memory_space<vmem>>, vector<8x256xf32>
    %8 = vector.broadcast %6 : vector<8x1xf32> to vector<8x256xf32>
    %9 = arith.mulf %7, %8 : vector<8x256xf32>
    %c0_4 = arith.constant 0 : index
    %c0_5 = arith.constant 0 : index
    %10 = vector.load %arg2[%c0_4, %c0_5] : memref<8x256xf32, #tpu.memory_space<vmem>>, vector<8x256xf32>
    tpu.vector_store %arg2[%c0_4, %c0_5], %9 {strides = array<i32>} : memref<8x256xf32, #tpu.memory_space<vmem>>, vector<8x256xf32>,
    return
  }
  func.func @transform_0(%arg0: i32) -> (i32, i32) {
    %c0_i32 = arith.constant 0 : i32
    %c0_i32_0 = arith.constant 0 : i32
    return %arg0, %c0_i32 : i32, i32
  }
  func.func @transform_1(%arg0: i32) -> (i32, i32) {
    %c0_i32 = arith.constant 0 : i32
    %c0_i32_0 = arith.constant 0 : i32
    return %arg0, %c0_i32 : i32, i32
  }
}

</mosaic_0001>

<llo_original>
// kernel: tpu_custom_call.1
$region0: #{tpu_custom_call.1}
  #allocation0 [shape = 'u32[]', space=smem, size = 0x4, offset = 0x4, fixed_abs, tag = 'smem constant byte address 0x4 - core index']
  #allocation1 [shape = 'u32[144,128]{1,0:T(1,128)}', space=vmem, size = 0x12000, scoped, tag = 'internal scratch']
  %s0 = inlined_call_operand.hbm [shape: f32[16,256], index: 0, kind: input, shape index: {}]
  %s1 = inlined_call_operand.hbm [shape: f32[16,256], index: 1, kind: output, shape index: {}]
  %s2 = sld [smem:[#allocation0]]
  $region41: #{tpu_custom_call.1} parent=0
    _
  %s4 = ssub.s32 1, %s2
  %s5 = scalar_select 0, %s4, %s2
  $region1: #{tpu_custom_call.1} parent=0
    #allocation2 [shape = 'u8[16384]{0}', space=vmem, size = 0x4000, scoped, tag = 'input window, operand 0']
    #allocation3 [shape = 's32[2]{0}', space=sflag, size = 0x8, scoped, tag = 'scoped memory for tpu_custom_call.1']
    #allocation4 [shape = 's32[2]{0}', space=sflag, size = 0x8, scoped, tag = 'scoped memory for tpu_custom_call.1']
    #allocation5 [shape = 'u8[16384]{0}', space=vmem, size = 0x4000, scoped, tag = 'output window, operand 0']
    %6 = vsyncpa [#allocation3], 0
    %s7 = scalar_lea.sflag [#allocation3], 1
    %8 = vsyncpa %s7, 0
    %9 = vsyncpa [#allocation4], 0
    %s10 = scalar_lea.sflag [#allocation4], 1
    %11 = vsyncpa %s10, 0
    loop: start=0, step=1, limit=4
    $region2: #{tpu_custom_call.1} parent=1 // loop_pre_header
      _
    $region3: #{tpu_custom_call.1} parent=1 // loop_header
      %s13 = sphi 0, %s17
      %p14 = scmp.ge.s32.totalorder %s13, 4
      %s23 = sphi 0, %s25
      %s26 = sphi 0, %s23
      %s27 = sphi 0, %s26
      %s43 = sphi 0, %s27
      %s49 = sphi 0, %s51
      %s52 = sphi 0, %s49
      %s53 = sphi 0, %s52
      %s69 = sphi 0, %s53
    $region4: #{tpu_custom_call.1} parent=1 // loop_header_branch
      %16 = sbr.rel (%p14) target = $region8
    $region5: #{tpu_custom_call.1} parent=1 // loop_body
      %s18 = ssub.s32 %s13, 1
      %s19 = ssub.s32 %s13, 2
      %s20 = sadd.s32 %s13, 1
      %s21 = ssub.s32 %s13, %s20
      %p22 = scmp.eq.s32.totalorder %s21, 0
      %s24 = sadd.s32 %s23, 1
      %s25 = scalar_select %p22, %s23, %s24
      %p28 = pneg %p22
      %p29 = scmp.eq.s32.totalorder %s13, 1
      %p30 = por %p28, %p29
      %p31 = scmp.ne.s32.totalorder %s23, %s26
      %p32 = scmp.eq.s32.totalorder %s13, 0
      %p33 = por %p31, %p32
      %p34 = scmp.ne.s32.totalorder %s23, %s26
      %p35 = scmp.eq.s32.totalorder %s18, 1
      %p36 = por %p34, %p35
      %p37 = scmp.ne.s32.totalorder %s26, %s27
      %p38 = scmp.eq.s32.totalorder %s18, 0
      %p39 = por %p37, %p38
      %p40 = scmp.ne.s32.totalorder %s26, %s27
      %p41 = scmp.eq.s32.totalorder %s19, 1
      %p42 = por %p40, %p41
      %p44 = scmp.ne.s32.totalorder %s27, %s43
      %p45 = scmp.eq.s32.totalorder %s19, 0
      %p46 = por %p44, %p45
      %s47 = ssub.s32 %s13, %s20
      %p48 = scmp.eq.s32.totalorder %s47, 0
      %s50 = sadd.s32 %s49, 1
      %s51 = scalar_select %p48, %s49, %s50
      %p54 = pneg %p48
      %p55 = scmp.eq.s32.totalorder %s13, 1
      %p56 = por %p54, %p55
      %p57 = scmp.ne.s32.totalorder %s49, %s52
      %p58 = scmp.eq.s32.totalorder %s13, 0
      %p59 = por %p57, %p58
      %p60 = scmp.ne.s32.totalorder %s49, %s52
      %p61 = scmp.eq.s32.totalorder %s18, 1
      %p62 = por %p60, %p61
      %p63 = scmp.ne.s32.totalorder %s52, %s53
      %p64 = scmp.eq.s32.totalorder %s18, 0
      %p65 = por %p63, %p64
      %p66 = scmp.ne.s32.totalorder %s52, %s53
      %p67 = scmp.eq.s32.totalorder %s19, 1
      %p68 = por %p66, %p67
      %p70 = scmp.ne.s32.totalorder %s53, %s69
      %p71 = scmp.eq.s32.totalorder %s19, 0
      %p72 = por %p70, %p71
      %p73 = scmp.le.s32.totalorder 1, %s13
      %p74 = scmp.lt.s32.totalorder %s13, 3
      %p75 = pnand %p73, %p74
      %p76 = pneg %p75
      // Predicated region
      $region9: #{tpu_custom_call.1} parent=5 // pred_check
        _
      $region10: #{tpu_custom_call.1} parent=5 // pred_check_branch
        %78 = sbr.rel (%p75) target = $region12
      $region11: #{tpu_custom_call.1} parent=5 // pred_region
        %s79 = ssub.s32 %s13, 1
      $region12: #{tpu_custom_call.1} parent=5 // pred_fallthru
        _
      %p80 = scmp.lt.s32.totalorder %s13, 2
      // Predicated region
      $region13: #{tpu_custom_call.1} parent=5 // pred_check
        %p81 = pneg %p80
      $region14: #{tpu_custom_call.1} parent=5 // pred_check_branch
        %83 = sbr.rel (%p81) target = $region16
      $region15: #{tpu_custom_call.1} parent=5 // pred_region
        // Predicated region
        $region17: #{tpu_custom_call.1} parent=15 // pred_check
          %p84 = pneg %p33
        $region18: #{tpu_custom_call.1} parent=15 // pred_check_branch
          %86 = sbr.rel (%p84) target = $region20
        $region19: #{tpu_custom_call.1} parent=15 // pred_region
          %s87 = sand.u32 %s23, 1
          %s88 = scalar_lea.sflag [#allocation3], %s87
          %s89 = sand.u32 %s23, 1
          %s90 = smul.addr %s89, 16
          %s91 = scalar_lea.vmem [#allocation2], %s90
          %s93 = ssub.s32 256, 256
          %94 = vsyncadd %s88, %s93
          %s95 = smul.addr %s13, 2
          %s96 = smul.addr %s95, 128
          %s97 = scalar_lea.hbm %s0, %s96
          %s99 = sshll.u32 %s91, 4
          %s100 = int_to_ptr.vmem [resolvable:$true] %s99
          %102 = dma.hbm_to_vmem [thread:$0]  %s97, 256, %s100, %s88
        $region20: #{tpu_custom_call.1} parent=15 // pred_fallthru
          _
      $region16: #{tpu_custom_call.1} parent=5 // pred_fallthru
        _
      %p103 = scmp.le.s32.totalorder 1, %s13
      %p104 = scmp.lt.s32.totalorder %s13, 3
      %p105 = pnand %p103, %p104
      %p106 = pneg %p105
      // Predicated region
      $region21: #{tpu_custom_call.1} parent=5 // pred_check
        _
      $region22: #{tpu_custom_call.1} parent=5 // pred_check_branch
        %108 = sbr.rel (%p105) target = $region24
      $region23: #{tpu_custom_call.1} parent=5 // pred_region
        %s109 = ssub.s32 %s13, 1
        %s110 = sand.u32 %s26, 1
        %s111 = scalar_lea.sflag [#allocation3], %s110
        %s112 = sand.u32 %s26, 1
        %s113 = smul.addr %s112, 16
        %s114 = scalar_lea.vmem [#allocation2], %s113
        // Predicated region
        $region25: #{tpu_custom_call.1} parent=23 // pred_check
          %p115 = pneg %p39
        $region26: #{tpu_custom_call.1} parent=23 // pred_check_branch
          %117 = sbr.rel (%p115) target = $region28
        $region27: #{tpu_custom_call.1} parent=23 // pred_region
          %118 = dma.done %s111, 256
        $region28: #{tpu_custom_call.1} parent=23 // pred_fallthru
          _
        %s119 = sand.u32 %s26, 1
        %s120 = scalar_lea.sflag [#allocation3], %s119
        %s121 = sand.u32 %s26, 1
        %s122 = smul.addr %s121, 16
        %s123 = scalar_lea.vmem [#allocation2], %s122
        %p124 = pneg %p39
        %p125 = pneg %p36
        %p126 = pneg %p65
        %p127 = pneg %p62
        %s128 = sand.u32 %s52, 1
        %s129 = scalar_lea.sflag [#allocation4], %s128
        %s130 = sand.u32 %s52, 1
        %s131 = smul.addr %s130, 16
        %s132 = scalar_lea.vmem [#allocation5], %s131
        %v133 = vld [vmem:[%s114] sm:$0xff]
        %v134 = vld [vmem:[%s114 + $0x8] sm:$0xff]
        %v135 = vmul.f32 %v133, %v133
        %v136 = vmul.f32 %v134, %v134
        %v137 = vadd.f32 %v135, %v136
        %138 = vadd.xlane.f32.xlu0 %v137
        %v139 = vpop.xlane.xlu0 %138
        %v140 = vmul.f32 %v139, 0.00390625
        %v141 = vrsqrt.pop %v140
        %v142 = vmul.f32 %v133, %v141
        %v143 = vmul.f32 %v134, %v141
        %144 = vst [vmem:[%s132] sm:$0xff] %v142
        %145 = vst [vmem:[%s132 + $0x8] sm:$0xff] %v143
        %s146 = sand.u32 %s52, 1
        %s147 = scalar_lea.sflag [#allocation4], %s146
        %s148 = sand.u32 %s52, 1
        %s149 = smul.addr %s148, 16
        %s150 = scalar_lea.vmem [#allocation5], %s149
        // Predicated region
        $region29: #{tpu_custom_call.1} parent=23 // pred_check
          %p151 = pneg %p62
        $region30: #{tpu_custom_call.1} parent=23 // pred_check_branch
          %153 = sbr.rel (%p151) target = $region32
        $region31: #{tpu_custom_call.1} parent=23 // pred_region
          %s155 = ssub.s32 256, 256
          %156 = vsyncadd %s147, %s155
          %s157 = smul.addr %s18, 2
          %s158 = smul.addr %s157, 128
          %s159 = scalar_lea.hbm %s1, %s158
          %s161 = sshll.u32 %s150, 4
          %s162 = int_to_ptr.vmem [resolvable:$true] %s161
          %164 = dma.vmem_to_hbm [thread:$0]  %s162, 256, %s159, %s147
        $region32: #{tpu_custom_call.1} parent=23 // pred_fallthru
          _
      $region24: #{tpu_custom_call.1} parent=5 // pred_fallthru
        _
      %p165 = scmp.le.s32.totalorder 2, %s13
      // Predicated region
      $region33: #{tpu_custom_call.1} parent=5 // pred_check
        %p166 = pneg %p165
      $region34: #{tpu_custom_call.1} parent=5 // pred_check_branch
        %168 = sbr.rel (%p166) target = $region36
      $region35: #{tpu_custom_call.1} parent=5 // pred_region
        %s169 = ssub.s32 %s13, 2
        // Predicated region
        $region37: #{tpu_custom_call.1} parent=35 // pred_check
          %p170 = pneg %p68
        $region38: #{tpu_custom_call.1} parent=35 // pred_check_branch
          %172 = sbr.rel (%p170) target = $region40
        $region39: #{tpu_custom_call.1} parent=35 // pred_region
          %s173 = sand.u32 %s53, 1
          %s174 = scalar_lea.sflag [#allocation4], %s173
          %s175 = sand.u32 %s53, 1
          %s176 = smul.addr %s175, 16
          %s177 = scalar_lea.vmem [#allocation5], %s176
          %178 = dma.done %s174, 256
        $region40: #{tpu_custom_call.1} parent=35 // pred_fallthru
          _
      $region36: #{tpu_custom_call.1} parent=5 // pred_fallthru
        _
    $region6: #{tpu_custom_call.1} parent=1 // loop_footer
      %s17 = sadd.s32 1, %s13
    $region7: #{tpu_custom_call.1} parent=1 // loop_footer_branch
      %12 = sbr.rel target = $region3
    $region8: #{tpu_custom_call.1} parent=1 // loop_exit
      _
    %179 = vsyncpa [#allocation3], 1
    %s180 = scalar_lea.sflag [#allocation3], 1
    %181 = vsyncpa %s180, 1
    %182 = vsyncpa [#allocation4], 1
    %s183 = scalar_lea.sflag [#allocation4], 1
    %184 = vsyncpa %s183, 1

</llo_original>
